<compile_context>
chip_gen: v7x
topology: tpu7x:2x2x1
jax: 0.10.0
libtpu: 0.0.40
codegen_flags: <defaults>
</compile_context>

<pallas_src>
import jax
import jax.numpy as jnp
from jax.experimental import pallas as pl
from jax.experimental.pallas import tpu as pltpu


def mlp_kernel(x_ref, w1_ref, b1_ref, w2_ref, b2_ref, w3_ref, b3_ref, o_ref):
    # x:  (tm, 1) f32        w1, b1: (1, H) f32
    # w2: (H, H)  bf16       b2:     (1, H) f32
    # w3: (1, H)  f32 (row)  b3:     (1, 1) f32 in SMEM
    # o:  (tm, 1) f32
    x = x_ref[...]                                                   # (tm, 1)

    # Layer 1 (in_features == 1): VPU broadcast multiply + bias + ReLU.
    h1 = jnp.maximum(x * w1_ref[...] + b1_ref[...], 0.0)             # (tm, H)

    # Layer 2 (H x H): the only real MXU matmul; bf16 operands, f32 accumulate.
    h2 = jnp.dot(h1.astype(w2_ref.dtype), w2_ref[...],
                 preferred_element_type=jnp.float32) + b2_ref[...]
    h2 = jnp.maximum(h2, 0.0)                                        # (tm, H)

    # Layer 3 (out_features == 1): VPU multiply + XLU lane reduce; scalar bias
    # read from SMEM.
    y = jnp.sum(h2 * w3_ref[...], axis=-1, keepdims=True)            # (tm, 1)
    o_ref[...] = y + b3_ref[0, 0]


def simple_mlp_forward(x, params, *, tile_m=256):
    """x: (N, 1) float32.  Returns (N, 1) float32."""
    w1, b1, w2, b2, w3, b3 = params
    N = x.shape[0]
    H = w1.shape[1]
    assert H % 128 == 0, "hidden_dim must be a multiple of 128 (TPU lane width)"
    assert tile_m % 8 == 0, "tile_m must be a multiple of 8 (TPU sublanes)"

    # Pad the batch to a multiple of tile_m; padded rows are sliced off below.
    num_tiles = pl.cdiv(N, tile_m)
    n_pad = num_tiles * tile_m
    if n_pad != N:
        x = jnp.pad(x, ((0, n_pad - N), (0, 0)))

    full = lambda i: (0, 0)  # weights/biases: same (whole-array) block each step

    bytes_accessed = (
        x.size * x.dtype.itemsize
        + n_pad * 4  # output
        + sum(int(p.size) * p.dtype.itemsize for p in (w1, b1, w2, b2, w3, b3))
    )
    cost = pl.CostEstimate(
        flops=2 * n_pad * H * H + 4 * n_pad * H,
        transcendentals=0,
        bytes_accessed=int(bytes_accessed),
    )

    out = pl.pallas_call(
        mlp_kernel,
        out_shape=jax.ShapeDtypeStruct((n_pad, 1), jnp.float32),
        grid_spec=pltpu.PrefetchScalarGridSpec(
            num_scalar_prefetch=0,
            grid=(num_tiles,),
            in_specs=[
                pl.BlockSpec((tile_m, 1), lambda i: (i, 0)),        # x tile
                pl.BlockSpec((1, H), full),                          # w1
                pl.BlockSpec((1, H), full),                          # b1
                pl.BlockSpec((H, H), full),                          # w2 (bf16)
                pl.BlockSpec((1, H), full),                          # b2
                pl.BlockSpec((1, H), full),                          # w3 (row)
                pl.BlockSpec(memory_space=pltpu.MemorySpace.SMEM),   # b3 scalar
            ],
            out_specs=pl.BlockSpec((tile_m, 1), lambda i: (i, 0)),
        ),
        compiler_params=pltpu.CompilerParams(
            dimension_semantics=("parallel",),
            # Headroom for the H=2048 production config: bf16 w2 double-
            # buffered (16 MiB) + f32 (tile_m, H) intermediates; stays well
            # under v7x's 64 MiB physical VMEM per TensorCore.
            vmem_limit_bytes=48 * 1024 * 1024,
        ),
        cost_estimate=cost,
    )(x, w1, b1, w2, b2, w3, b3)

    return out[:N]


def init_params(key, hidden_dim, *, w2_dtype=jnp.bfloat16):
    """Deterministic init mimicking nn.Linear default (U[-1/sqrt(fan_in), +])."""
    ks = jax.random.split(key, 6)

    def lin(kw, kb, fan_in, shape_w, shape_b):
        bound = 1.0 / float(fan_in) ** 0.5
        w = jax.random.uniform(kw, shape_w, jnp.float32, -bound, bound)
        b = jax.random.uniform(kb, shape_b, jnp.float32, -bound, bound)
        return w, b

    w1, b1 = lin(ks[0], ks[1], 1, (1, hidden_dim), (1, hidden_dim))
    w2, b2 = lin(ks[2], ks[3], hidden_dim, (hidden_dim, hidden_dim), (1, hidden_dim))
    w3, b3 = lin(ks[4], ks[5], hidden_dim, (1, hidden_dim), (1, 1))
    return (w1, b1, w2.astype(w2_dtype), b2, w3, b3)


if __name__ == "__main__":
    key = jax.random.PRNGKey(0)
    H = 256    # hidden_dim (module default is 2048; kept small for the demo)
    N = 1000   # like np.linspace(0, 10, 2000); deliberately NOT a tile multiple

    _, kp = jax.random.split(key)
    x = jnp.linspace(0.0, 10.0, N, dtype=jnp.float32).reshape(N, 1)
    params = init_params(kp, H)

    out = simple_mlp_forward(x, params, tile_m=256)
    out = jax.block_until_ready(out)

    # Reference in plain JAX with the same dtypes as the kernel.
    w1, b1, w2, b2, w3, b3 = params
    h1 = jnp.maximum(x * w1 + b1, 0.0)
    h2 = jnp.maximum(
        jnp.dot(h1.astype(w2.dtype), w2, preferred_element_type=jnp.float32) + b2,
        0.0,
    )
    ref = jnp.sum(h2 * w3, axis=-1, keepdims=True) + b3

    assert out.shape == (N, 1)
    assert jnp.allclose(out, ref, atol=2e-2, rtol=2e-2), float(
        jnp.max(jnp.abs(out - ref))
    )

    print("KERNEL_OK")
</pallas_src>

<mosaic_0001>
module attributes {stable_mosaic.version = 11 : i64} {
  func.func @mlp_kernel(%arg0: i32, %arg1: memref<256x1xf32, #tpu.memory_space<vmem>>, %arg2: memref<1x256xf32, #tpu.memory_space<vmem>>, %arg3: memref<1x256xf32, #tpu.memory_space<vmem>>, %arg4: memref<256x256xbf16, #tpu.memory_space<vmem>>, %arg5: memref<1x256xf32, #tpu.memory_space<vmem>>, %arg6: memref<1x256xf32, #tpu.memory_space<vmem>>, %arg7: memref<1x1xf32, #tpu.memory_space<smem>>, %arg8: memref<256x1xf32, #tpu.memory_space<vmem>>) attributes {dimension_semantics = [#tpu.dimension_semantics<parallel>], iteration_bounds = array<i64: 4>, scalar_prefetch = 0 : i64, scratch_operands = 0 : i64, tpu.core_type = #tpu.core_type<tc>, window_params = [{transform_indices = @transform_0, window_bounds = array<i64: 256, 1>}, {pipeline_mode = #tpu.pipeline_mode<synchronous>, transform_indices = @transform_1, window_bounds = array<i64: 1, 256>}, {pipeline_mode = #tpu.pipeline_mode<synchronous>, transform_indices = @transform_2, window_bounds = array<i64: 1, 256>}, {pipeline_mode = #tpu.pipeline_mode<synchronous>, transform_indices = @transform_3, window_bounds = array<i64: 256, 256>}, {pipeline_mode = #tpu.pipeline_mode<synchronous>, transform_indices = @transform_4, window_bounds = array<i64: 1, 256>}, {pipeline_mode = #tpu.pipeline_mode<synchronous>, transform_indices = @transform_5, window_bounds = array<i64: 1, 256>}, {transform_indices = @transform_6, window_bounds = array<i64: 1, 1>}, {transform_indices = @transform_7, window_bounds = array<i64: 256, 1>}]} {
    %c0 = arith.constant 0 : index
    %c0_0 = arith.constant 0 : index
    %0 = vector.load %arg1[%c0, %c0_0] : memref<256x1xf32, #tpu.memory_space<vmem>>, vector<256x1xf32>
    %c0_1 = arith.constant 0 : index
    %c0_2 = arith.constant 0 : index
    %1 = vector.load %arg2[%c0_1, %c0_2] : memref<1x256xf32, #tpu.memory_space<vmem>>, vector<1x256xf32>
    %2 = vector.broadcast %0 : vector<256x1xf32> to vector<256x256xf32>
    %3 = vector.broadcast %1 : vector<1x256xf32> to vector<256x256xf32>
    %4 = arith.mulf %2, %3 : vector<256x256xf32>
    %c0_3 = arith.constant 0 : index
    %c0_4 = arith.constant 0 : index
    %5 = vector.load %arg3[%c0_3, %c0_4] : memref<1x256xf32, #tpu.memory_space<vmem>>, vector<1x256xf32>
    %6 = vector.broadcast %5 : vector<1x256xf32> to vector<256x256xf32>
    %7 = arith.addf %4, %6 : vector<256x256xf32>
    %cst = arith.constant 0.000000e+00 : f32
    %8 = vector.broadcast %cst : f32 to vector<256x256xf32>
    %9 = arith.maximumf %7, %8 : vector<256x256xf32>
    %10 = arith.truncf %9 : vector<256x256xf32> to vector<256x256xbf16>
    %c0_5 = arith.constant 0 : index
    %c0_6 = arith.constant 0 : index
    %11 = vector.load %arg4[%c0_5, %c0_6] : memref<256x256xbf16, #tpu.memory_space<vmem>>, vector<256x256xbf16>
    %cst_7 = arith.constant dense<0.000000e+00> : vector<256x256xf32>
    %12 = tpu.matmul %10, %11, %cst_7 {dimension_numbers = #tpu.dot_dimension_numbers<[1], [0], [0], [1], [0, 0, 1, 1], [], []>} : vector<256x256xbf16>, vector<256x256xbf16>, vector<256x256xf32> -> vector<256x256xf32>
    %c0_8 = arith.constant 0 : index
    %c0_9 = arith.constant 0 : index
    %13 = vector.load %arg5[%c0_8, %c0_9] : memref<1x256xf32, #tpu.memory_space<vmem>>, vector<1x256xf32>
    %14 = vector.broadcast %13 : vector<1x256xf32> to vector<256x256xf32>
    %15 = arith.addf %12, %14 : vector<256x256xf32>
    %cst_10 = arith.constant 0.000000e+00 : f32
    %16 = vector.broadcast %cst_10 : f32 to vector<256x256xf32>
    %17 = arith.maximumf %15, %16 : vector<256x256xf32>
    %c0_11 = arith.constant 0 : index
    %c0_12 = arith.constant 0 : index
    %18 = vector.load %arg6[%c0_11, %c0_12] : memref<1x256xf32, #tpu.memory_space<vmem>>, vector<1x256xf32>
    %19 = vector.broadcast %18 : vector<1x256xf32> to vector<256x256xf32>
    %20 = arith.mulf %17, %19 : vector<256x256xf32>
    %cst_13 = arith.constant dense<0.000000e+00> : vector<256xf32>
    %21 = vector.multi_reduction <add>, %20, %cst_13 [1] : vector<256x256xf32> to vector<256xf32>
    %22 = vector.shape_cast %21 : vector<256xf32> to vector<256x1xf32>
    %c0_14 = arith.constant 0 : index
    %c0_15 = arith.constant 0 : index
    %23 = memref.load %arg7[%c0_14, %c0_15] : memref<1x1xf32, #tpu.memory_space<smem>>
    %24 = vector.broadcast %23 : f32 to vector<256x1xf32>
    %25 = arith.addf %22, %24 : vector<256x1xf32>
    %c0_16 = arith.constant 0 : index
    %c0_17 = arith.constant 0 : index
    %26 = vector.load %arg8[%c0_16, %c0_17] : memref<256x1xf32, #tpu.memory_space<vmem>>, vector<256x1xf32>
    tpu.vector_store %arg8[%c0_16, %c0_17], %25 {strides = array<i32>} : memref<256x1xf32, #tpu.memory_space<vmem>>, vector<256x1xf32>,
    return
  }
  func.func @transform_0(%arg0: i32) -> (i32, i32) {
    %c0_i32 = arith.constant 0 : i32
    %c0_i32_0 = arith.constant 0 : i32
    return %arg0, %c0_i32 : i32, i32
  }
  func.func @transform_1(%arg0: i32) -> (i32, i32) {
    %c0_i32 = arith.constant 0 : i32
    %c0_i32_0 = arith.constant 0 : i32
    %c0_i32_1 = arith.constant 0 : i32
    return %c0_i32, %c0_i32_0 : i32, i32
  }
  func.func @transform_2(%arg0: i32) -> (i32, i32) {
    %c0_i32 = arith.constant 0 : i32
    %c0_i32_0 = arith.constant 0 : i32
    %c0_i32_1 = arith.constant 0 : i32
    return %c0_i32, %c0_i32_0 : i32, i32
  }
  func.func @transform_3(%arg0: i32) -> (i32, i32) {
    %c0_i32 = arith.constant 0 : i32
    %c0_i32_0 = arith.constant 0 : i32
    %c0_i32_1 = arith.constant 0 : i32
    return %c0_i32, %c0_i32_0 : i32, i32
  }
  func.func @transform_4(%arg0: i32) -> (i32, i32) {
    %c0_i32 = arith.constant 0 : i32
    %c0_i32_0 = arith.constant 0 : i32
    %c0_i32_1 = arith.constant 0 : i32
    return %c0_i32, %c0_i32_0 : i32, i32
  }
  func.func @transform_5(%arg0: i32) -> (i32, i32) {
    %c0_i32 = arith.constant 0 : i32
    %c0_i32_0 = arith.constant 0 : i32
    %c0_i32_1 = arith.constant 0 : i32
    return %c0_i32, %c0_i32_0 : i32, i32
  }
  func.func @transform_6(%arg0: i32) -> (i32, i32) {
    %c0_i32 = arith.constant 0 : i32
    %c0_i32_0 = arith.constant 0 : i32
    %c0_i32_1 = arith.constant 0 : i32
    return %c0_i32, %c0_i32_0 : i32, i32
  }
  func.func @transform_7(%arg0: i32) -> (i32, i32) {
    %c0_i32 = arith.constant 0 : i32
    %c0_i32_0 = arith.constant 0 : i32
    return %arg0, %c0_i32 : i32, i32
  }
}

</mosaic_0001>

<llo_original>
// kernel: tpu_custom_call.1
$region0: #{tpu_custom_call.1}
  #allocation0 [shape = 'u32[]', space=smem, size = 0x4, offset = 0x4, fixed_abs, tag = 'smem constant byte address 0x4 - core index']
  #allocation1 [shape = 'u32[144,128]{1,0:T(1,128)}', space=vmem, size = 0x12000, scoped, tag = 'internal scratch']
  #allocation2 [shape = 'f32[1,1]{1,0:T(1,128)S(6)}', space=smem, size = 0x200, scoped, tag = 'scoped memory for tpu_custom_call.1']
  %s0 = inlined_call_operand.vmem [shape: f32[1024,1], index: 0, kind: input, shape index: {}]
  %s1 = inlined_call_operand.vmem [shape: f32[1,256], index: 1, kind: input, shape index: {}]
  %s2 = inlined_call_operand.vmem [shape: f32[1,256], index: 2, kind: input, shape index: {}]
  %s3 = inlined_call_operand.vmem [shape: bf16[256,256], index: 3, kind: input, shape index: {}]
  %s4 = inlined_call_operand.vmem [shape: f32[1,256], index: 4, kind: input, shape index: {}]
  %s5 = inlined_call_operand.vmem [shape: f32[1,256], index: 5, kind: input, shape index: {}]
  %s6 = inlined_call_operand.<no memory space> [shape: f32[1,1], index: 6, kind: input, shape index: {}]
  %s7 = inlined_call_operand.vmem [shape: f32[1024,1], index: 7, kind: output, shape index: {}]
  %s8 = sld [smem:[#allocation0]]
  $region61: #{tpu_custom_call.1} parent=0
    _
  %s10 = ssub.s32 1, %s8
  %s11 = scalar_select 0, %s10, %s8
  %12 = sst [smem:[#allocation2]] %s6
  loop: start=0, step=1, limit=6
  $region2: #{tpu_custom_call.1} parent=0 // loop_pre_header
    _
  $region3: #{tpu_custom_call.1} parent=0 // loop_header
    %s14 = sphi 0, %s18
    %p15 = scmp.ge.s32.totalorder %s14, 6
    %s24 = sphi 0, %s26
    %s27 = sphi 0, %s24
    %s28 = sphi 0, %s27
    %s44 = sphi 0, %s28
    %s48 = sphi 0, %s48
    %s50 = sphi 0, %s48
    %s51 = sphi 0, %s50
    %s65 = sphi 0, %s51
    %s69 = sphi 0, %s69
    %s71 = sphi 0, %s69
    %s72 = sphi 0, %s71
    %s86 = sphi 0, %s72
    %s90 = sphi 0, %s90
    %s92 = sphi 0, %s90
    %s93 = sphi 0, %s92
    %s107 = sphi 0, %s93
    %s111 = sphi 0, %s111
    %s113 = sphi 0, %s111
    %s114 = sphi 0, %s113
    %s128 = sphi 0, %s114
    %s132 = sphi 0, %s132
    %s134 = sphi 0, %s132
    %s135 = sphi 0, %s134
    %s149 = sphi 0, %s135
    %s153 = sphi 0, %s153
    %s155 = sphi 0, %s153
    %s156 = sphi 0, %s155
    %s170 = sphi 0, %s156
    %s176 = sphi 0, %s178
    %s179 = sphi 0, %s176
    %s180 = sphi 0, %s179
    %s196 = sphi 0, %s180
  $region4: #{tpu_custom_call.1} parent=0 // loop_header_branch
    %17 = sbr.rel (%p15) target = $region8
  $region5: #{tpu_custom_call.1} parent=0 // loop_body
    %s19 = ssub.s32 %s14, 1
    %s20 = ssub.s32 %s14, 2
    %s21 = sadd.s32 %s14, 1
    %s22 = ssub.s32 %s14, %s21
    %p23 = scmp.eq.s32.totalorder %s22, 0
    %s25 = sadd.s32 %s24, 1
    %s26 = scalar_select %p23, %s24, %s25
    %p29 = pneg %p23
    %p30 = scmp.eq.s32.totalorder %s14, 3
    %p31 = por %p29, %p30
    %p32 = scmp.ne.s32.totalorder %s24, %s27
    %p33 = scmp.eq.s32.totalorder %s14, 0
    %p34 = por %p32, %p33
    %p35 = scmp.ne.s32.totalorder %s24, %s27
    %p36 = scmp.eq.s32.totalorder %s19, 3
    %p37 = por %p35, %p36
    %p38 = scmp.ne.s32.totalorder %s27, %s28
    %p39 = scmp.eq.s32.totalorder %s19, 0
    %p40 = por %p38, %p39
    %p41 = scmp.ne.s32.totalorder %s27, %s28
    %p42 = scmp.eq.s32.totalorder %s20, 3
    %p43 = por %p41, %p42
    %p45 = scmp.ne.s32.totalorder %s28, %s44
    %p46 = scmp.eq.s32.totalorder %s20, 0
    %p47 = por %p45, %p46
    %s49 = sadd.s32 %s48, 1
    %p52 = scmp.eq.s32.totalorder %s14, 3
    %p53 = scmp.ne.s32.totalorder %s48, %s50
    %p54 = scmp.eq.s32.totalorder %s14, 0
    %p55 = por %p53, %p54
    %p56 = scmp.ne.s32.totalorder %s48, %s50
    %p57 = scmp.eq.s32.totalorder %s19, 3
    %p58 = por %p56, %p57
    %p59 = scmp.ne.s32.totalorder %s50, %s51
    %p60 = scmp.eq.s32.totalorder %s19, 0
    %p61 = por %p59, %p60
    %p62 = scmp.ne.s32.totalorder %s50, %s51
    %p63 = scmp.eq.s32.totalorder %s20, 3
    %p64 = por %p62, %p63
    %p66 = scmp.ne.s32.totalorder %s51, %s65
    %p67 = scmp.eq.s32.totalorder %s20, 0
    %p68 = por %p66, %p67
    %s70 = sadd.s32 %s69, 1
    %p73 = scmp.eq.s32.totalorder %s14, 3
    %p74 = scmp.ne.s32.totalorder %s69, %s71
    %p75 = scmp.eq.s32.totalorder %s14, 0
    %p76 = por %p74, %p75
    %p77 = scmp.ne.s32.totalorder %s69, %s71
    %p78 = scmp.eq.s32.totalorder %s19, 3
    %p79 = por %p77, %p78
    %p80 = scmp.ne.s32.totalorder %s71, %s72
    %p81 = scmp.eq.s32.totalorder %s19, 0
    %p82 = por %p80, %p81
    %p83 = scmp.ne.s32.totalorder %s71, %s72
    %p84 = scmp.eq.s32.totalorder %s20, 3
    %p85 = por %p83, %p84
    %p87 = scmp.ne.s32.totalorder %s72, %s86
    %p88 = scmp.eq.s32.totalorder %s20, 0
    %p89 = por %p87, %p88
    %s91 = sadd.s32 %s90, 1
    %p94 = scmp.eq.s32.totalorder %s14, 3
    %p95 = scmp.ne.s32.totalorder %s90, %s92
    %p96 = scmp.eq.s32.totalorder %s14, 0
    %p97 = por %p95, %p96
    %p98 = scmp.ne.s32.totalorder %s90, %s92
    %p99 = scmp.eq.s32.totalorder %s19, 3
    %p100 = por %p98, %p99
    %p101 = scmp.ne.s32.totalorder %s92, %s93
    %p102 = scmp.eq.s32.totalorder %s19, 0
    %p103 = por %p101, %p102
    %p104 = scmp.ne.s32.totalorder %s92, %s93
    %p105 = scmp.eq.s32.totalorder %s20, 3
    %p106 = por %p104, %p105
    %p108 = scmp.ne.s32.totalorder %s93, %s107
    %p109 = scmp.eq.s32.totalorder %s20, 0
    %p110 = por %p108, %p109
    %s112 = sadd.s32 %s111, 1
    %p115 = scmp.eq.s32.totalorder %s14, 3
    %p116 = scmp.ne.s32.totalorder %s111, %s113
    %p117 = scmp.eq.s32.totalorder %s14, 0
    %p118 = por %p116, %p117
    %p119 = scmp.ne.s32.totalorder %s111, %s113
    %p120 = scmp.eq.s32.totalorder %s19, 3
    %p121 = por %p119, %p120
    %p122 = scmp.ne.s32.totalorder %s113, %s114
    %p123 = scmp.eq.s32.totalorder %s19, 0
    %p124 = por %p122, %p123
    %p125 = scmp.ne.s32.totalorder %s113, %s114
    %p126 = scmp.eq.s32.totalorder %s20, 3
    %p127 = por %p125, %p126
    %p129 = scmp.ne.s32.totalorder %s114, %s128
    %p130 = scmp.eq.s32.totalorder %s20, 0
    %p131 = por %p129, %p130
    %s133 = sadd.s32 %s132, 1
    %p136 = scmp.eq.s32.totalorder %s14, 3
    %p137 = scmp.ne.s32.totalorder %s132, %s134
    %p138 = scmp.eq.s32.totalorder %s14, 0
    %p139 = por %p137, %p138
    %p140 = scmp.ne.s32.totalorder %s132, %s134
    %p141 = scmp.eq.s32.totalorder %s19, 3
    %p142 = por %p140, %p141
    %p143 = scmp.ne.s32.totalorder %s134, %s135
    %p144 = scmp.eq.s32.totalorder %s19, 0
    %p145 = por %p143, %p144
    %p146 = scmp.ne.s32.totalorder %s134, %s135
    %p147 = scmp.eq.s32.totalorder %s20, 3
    %p148 = por %p146, %p147
    %p150 = scmp.ne.s32.totalorder %s135, %s149
    %p151 = scmp.eq.s32.totalorder %s20, 0
    %p152 = por %p150, %p151
    %s154 = sadd.s32 %s153, 1
    %p157 = scmp.eq.s32.totalorder %s14, 3
    %p158 = scmp.ne.s32.totalorder %s153, %s155
    %p159 = scmp.eq.s32.totalorder %s14, 0
    %p160 = por %p158, %p159
    %p161 = scmp.ne.s32.totalorder %s153, %s155
    %p162 = scmp.eq.s32.totalorder %s19, 3
    %p163 = por %p161, %p162
    %p164 = scmp.ne.s32.totalorder %s155, %s156
    %p165 = scmp.eq.s32.totalorder %s19, 0
    %p166 = por %p164, %p165
    %p167 = scmp.ne.s32.totalorder %s155, %s156
    %p168 = scmp.eq.s32.totalorder %s20, 3
    %p169 = por %p167, %p168
    %p171 = scmp.ne.s32.totalorder %s156, %s170
    %p172 = scmp.eq.s32.totalorder %s20, 0
    %p173 = por %p171, %p172
    %s174 = ssub.s32 %s14, %s21
    %p175 = scmp.eq.s32.totalorder %s174, 0
    %s177 = sadd.s32 %s176, 1
    %s178 = scalar_select %p175, %s176, %s177
    %p181 = pneg %p175
    %p182 = scmp.eq.s32.totalorder %s14, 3
    %p183 = por %p181, %p182
    %p184 = scmp.ne.s32.totalorder %s176, %s179
    %p185 = scmp.eq.s32.totalorder %s14, 0
    %p186 = por %p184, %p185
    %p187 = scmp.ne.s32.totalorder %s176, %s179
    %p188 = scmp.eq.s32.totalorder %s19, 3
    %p189 = por %p187, %p188
    %p190 = scmp.ne.s32.totalorder %s179, %s180
    %p191 = scmp.eq.s32.totalorder %s19, 0
    %p192 = por %p190, %p191
    %p193 = scmp.ne.s32.totalorder %s179, %s180
    %p194 = scmp.eq.s32.totalorder %s20, 3
    %p195 = por %p193, %p194
    %p197 = scmp.ne.s32.totalorder %s180, %s196
    %p198 = scmp.eq.s32.totalorder %s20, 0
    %p199 = por %p197, %p198
    %p200 = scmp.le.s32.totalorder 1, %s14
    %p201 = scmp.lt.s32.totalorder %s14, 5
    %p202 = pnand %p200, %p201
    %p203 = pneg %p202
    // Predicated region
    $region9: #{tpu_custom_call.1} parent=5 // pred_check
      _
    $region10: #{tpu_custom_call.1} parent=5 // pred_check_branch
      %205 = sbr.rel (%p202) target = $region12
    $region11: #{tpu_custom_call.1} parent=5 // pred_region
      %s206 = ssub.s32 %s14, 1
      // Predicated region
      $region13: #{tpu_custom_call.1} parent=11 // pred_check
        %p207 = pneg %p61
      $region14: #{tpu_custom_call.1} parent=11 // pred_check_branch
        %209 = sbr.rel (%p207) target = $region16
      $region15: #{tpu_custom_call.1} parent=11 // pred_region
        _
      $region16: #{tpu_custom_call.1} parent=11 // pred_fallthru
        _
      // Predicated region
      $region17: #{tpu_custom_call.1} parent=11 // pred_check
        %p210 = pneg %p82
      $region18: #{tpu_custom_call.1} parent=11 // pred_check_branch
        %212 = sbr.rel (%p210) target = $region20
      $region19: #{tpu_custom_call.1} parent=11 // pred_region
        _
      $region20: #{tpu_custom_call.1} parent=11 // pred_fallthru
        _
      // Predicated region
      $region21: #{tpu_custom_call.1} parent=11 // pred_check
        %p213 = pneg %p103
      $region22: #{tpu_custom_call.1} parent=11 // pred_check_branch
        %215 = sbr.rel (%p213) target = $region24
      $region23: #{tpu_custom_call.1} parent=11 // pred_region
        _
      $region24: #{tpu_custom_call.1} parent=11 // pred_fallthru
        _
      // Predicated region
      $region25: #{tpu_custom_call.1} parent=11 // pred_check
        %p216 = pneg %p124
      $region26: #{tpu_custom_call.1} parent=11 // pred_check_branch
        %218 = sbr.rel (%p216) target = $region28
      $region27: #{tpu_custom_call.1} parent=11 // pred_region
        _
      $region28: #{tpu_custom_call.1} parent=11 // pred_fallthru
        _
      // Predicated region
      $region29: #{tpu_custom_call.1} parent=11 // pred_check
        %p219 = pneg %p145
      $region30: #{tpu_custom_call.1} parent=11 // pred_check_branch
        %221 = sbr.rel (%p219) target = $region32
      $region31: #{tpu_custom_call.1} parent=11 // pred_region
        _
      $region32: #{tpu_custom_call.1} parent=11 // pred_fallthru
        _
      // Predicated region
      $region33: #{tpu_custom_call.1} parent=11 // pred_check
        %p222 = pneg %p166
      $region34: #{tpu_custom_call.1} parent=11 // pred_check_branch
        %224 = sbr.rel (%p222) target = $region36
      $region35: #{tpu_custom_call.1} parent=11 // pred_region
        _
      $region36: #{tpu_custom_call.1} parent=11 // pred_fallthru
        _
    $region12: #{tpu_custom_call.1} parent=5 // pred_fallthru
      _
    %p225 = scmp.lt.s32.totalorder %s14, 4
    // Predicated region
    $region37: #{tpu_custom_call.1} parent=5 // pred_check
      %p226 = pneg %p225
    $region38: #{tpu_custom_call.1} parent=5 // pred_check_branch
      %228 = sbr.rel (%p226) target = $region40
    $region39: #{tpu_custom_call.1} parent=5 // pred_region
      // Predicated region
      $region41: #{tpu_custom_call.1} parent=39 // pred_check
        %p229 = pneg %p34
      $region42: #{tpu_custom_call.1} parent=39 // pred_check_branch
        %231 = sbr.rel (%p229) target = $region44
      $region43: #{tpu_custom_call.1} parent=39 // pred_region
        %s232 = smul.u32 32, %s14
        %p233 = scmp.lt.s32.totalorder %s232, 127
        %s234 = scalar_select %p233, %s232, 127
        %s235 = smul.addr %s234, 8
        %s236 = scalar_lea.vmem %s0, %s235
        %s237 = smul.u32 32, %s14
      $region44: #{tpu_custom_call.1} parent=39 // pred_fallthru
        _
    $region40: #{tpu_custom_call.1} parent=5 // pred_fallthru
      _
    %p238 = scmp.le.s32.totalorder 1, %s14
    %p239 = scmp.lt.s32.totalorder %s14, 5
    %p240 = pnand %p238, %p239
    %p241 = pneg %p240
    // Predicated region
    $region45: #{tpu_custom_call.1} parent=5 // pred_check
      _
    $region46: #{tpu_custom_call.1} parent=5 // pred_check_branch
      %243 = sbr.rel (%p240) target = $region48
    $region47: #{tpu_custom_call.1} parent=5 // pred_region
      %s244 = ssub.s32 %s14, 1
      %s245 = smul.u32 32, %s19
      %p246 = scmp.lt.s32.totalorder %s245, 127
      %s247 = scalar_select %p246, %s245, 127
      %s248 = smul.addr %s247, 8
      %s249 = scalar_lea.vmem %s0, %s248
      %p250 = pneg %p40
      %p251 = pneg %p37
      %p252 = pneg %p61
      %p253 = pneg %p58
      %p254 = pneg %p82
      %p255 = pneg %p79
      %p256 = pneg %p103
      %p257 = pneg %p100
      %p258 = pneg %p124
      %p259 = pneg %p121
      %p260 = pneg %p145
      %p261 = pneg %p142
      %p262 = pneg %p166
      %p263 = pneg %p163
      %p264 = pneg %p192
      %p265 = pneg %p189
      %s266 = smul.u32 32, %s19
      %p267 = scmp.lt.s32.totalorder %s266, 127
      %s268 = scalar_select %p267, %s266, 127
      %s269 = smul.addr %s268, 8
      %s270 = scalar_lea.vmem %s7, %s269
      %s271 = smul.u32 32, %s19
      %p272 = scmp.lt.s32.totalorder %s271, 127
      %s273 = scalar_select %p272, %s271, 127
      %s274 = smul.addr %s273, 8
      %s275 = scalar_lea.vmem %s0, %s274
      %s276 = smul.u32 32, %s19
      %s277 = smul.u32 32, %s19
      %p278 = scmp.lt.s32.totalorder %s277, 127
      %s279 = scalar_select %p278, %s277, 127
      %s280 = smul.addr %s279, 8
      %s281 = scalar_lea.vmem %s7, %s280
      %s282 = smul.u32 32, %s19
      %v283 = vld [vmem:[%s275] sm:$0xff]
      %v284 = vld [vmem:[%s275 + $0x8] sm:$0xff]
      %v285 = vld [vmem:[%s275 + $0x10] sm:$0xff]
      %v286 = vld [vmem:[%s275 + $0x18] sm:$0xff]
      %v287 = vld [vmem:[%s275 + $0x20] sm:$0xff]
      %v288 = vld [vmem:[%s275 + $0x28] sm:$0xff]
      %v289 = vld [vmem:[%s275 + $0x30] sm:$0xff]
      %v290 = vld [vmem:[%s275 + $0x38] sm:$0xff]
      %v291 = vld [vmem:[%s275 + $0x40] sm:$0xff]
      %v292 = vld [vmem:[%s275 + $0x48] sm:$0xff]
      %v293 = vld [vmem:[%s275 + $0x50] sm:$0xff]
      %v294 = vld [vmem:[%s275 + $0x58] sm:$0xff]
      %v295 = vld [vmem:[%s275 + $0x60] sm:$0xff]
      %v296 = vld [vmem:[%s275 + $0x68] sm:$0xff]
      %v297 = vld [vmem:[%s275 + $0x70] sm:$0xff]
      %v298 = vld [vmem:[%s275 + $0x78] sm:$0xff]
      %v299 = vld [vmem:[%s275 + $0x80] sm:$0xff]
      %v300 = vld [vmem:[%s275 + $0x88] sm:$0xff]
      %v301 = vld [vmem:[%s275 + $0x90] sm:$0xff]
      %v302 = vld [vmem:[%s275 + $0x98] sm:$0xff]
      %v303 = vld [vmem:[%s275 + $0xa0] sm:$0xff]
      %v304 = vld [vmem:[%s275 + $0xa8] sm:$0xff]
      %v305 = vld [vmem:[%s275 + $0xb0] sm:$0xff]
      %v306 = vld [vmem:[%s275 + $0xb8] sm:$0xff]
      %v307 = vld [vmem:[%s275 + $0xc0] sm:$0xff]
      %v308 = vld [vmem:[%s275 + $0xc8] sm:$0xff]
      %v309 = vld [vmem:[%s275 + $0xd0] sm:$0xff]
      %v310 = vld [vmem:[%s275 + $0xd8] sm:$0xff]
      %v311 = vld [vmem:[%s275 + $0xe0] sm:$0xff]
      %v312 = vld [vmem:[%s275 + $0xe8] sm:$0xff]
      %v313 = vld [vmem:[%s275 + $0xf0] sm:$0xff]
      %v314 = vld [vmem:[%s275 + $0xf8] sm:$0xff]
      %v315 = vld [vmem:[%s1] sm:$0x3]
      %317 = vset.pattern.permute.xlu0 0
      %318 = vperm.xlu0 %317, %v283
      %v319 = vpop.permute.xlu0 %318
      %322 = vset.pattern.permute.xlu0 0
      %323 = vperm.xlu0 %322, %v284
      %v324 = vpop.permute.xlu0 %323
      %327 = vset.pattern.permute.xlu0 0
      %328 = vperm.xlu0 %327, %v285
      %v329 = vpop.permute.xlu0 %328
      %332 = vset.pattern.permute.xlu0 0
      %333 = vperm.xlu0 %332, %v286
      %v334 = vpop.permute.xlu0 %333
      %337 = vset.pattern.permute.xlu0 0
      %338 = vperm.xlu0 %337, %v287
      %v339 = vpop.permute.xlu0 %338
      %342 = vset.pattern.permute.xlu0 0
      %343 = vperm.xlu0 %342, %v288
      %v344 = vpop.permute.xlu0 %343
      %347 = vset.pattern.permute.xlu0 0
      %348 = vperm.xlu0 %347, %v289
      %v349 = vpop.permute.xlu0 %348
      %352 = vset.pattern.permute.xlu0 0
      %353 = vperm.xlu0 %352, %v290
      %v354 = vpop.permute.xlu0 %353
      %357 = vset.pattern.permute.xlu0 0
      %358 = vperm.xlu0 %357, %v291
      %v359 = vpop.permute.xlu0 %358
      %362 = vset.pattern.permute.xlu0 0
      %363 = vperm.xlu0 %362, %v292
      %v364 = vpop.permute.xlu0 %363
      %367 = vset.pattern.permute.xlu0 0
      %368 = vperm.xlu0 %367, %v293
      %v369 = vpop.permute.xlu0 %368
      %372 = vset.pattern.permute.xlu0 0
      %373 = vperm.xlu0 %372, %v294
      %v374 = vpop.permute.xlu0 %373
      %377 = vset.pattern.permute.xlu0 0
      %378 = vperm.xlu0 %377, %v295
      %v379 = vpop.permute.xlu0 %378
      %382 = vset.pattern.permute.xlu0 0
      %383 = vperm.xlu0 %382, %v296
      %v384 = vpop.permute.xlu0 %383
      %387 = vset.pattern.permute.xlu0 0
      %388 = vperm.xlu0 %387, %v297
      %v389 = vpop.permute.xlu0 %388
      %392 = vset.pattern.permute.xlu0 0
      %393 = vperm.xlu0 %392, %v298
      %v394 = vpop.permute.xlu0 %393
      %397 = vset.pattern.permute.xlu0 0
      %398 = vperm.xlu0 %397, %v299
      %v399 = vpop.permute.xlu0 %398
      %402 = vset.pattern.permute.xlu0 0
      %403 = vperm.xlu0 %402, %v300
      %v404 = vpop.permute.xlu0 %403
      %407 = vset.pattern.permute.xlu0 0
      %408 = vperm.xlu0 %407, %v301
      %v409 = vpop.permute.xlu0 %408
      %412 = vset.pattern.permute.xlu0 0
      %413 = vperm.xlu0 %412, %v302
      %v414 = vpop.permute.xlu0 %413
      %417 = vset.pattern.permute.xlu0 0
      %418 = vperm.xlu0 %417, %v303
      %v419 = vpop.permute.xlu0 %418
      %422 = vset.pattern.permute.xlu0 0
      %423 = vperm.xlu0 %422, %v304
      %v424 = vpop.permute.xlu0 %423
      %427 = vset.pattern.permute.xlu0 0
      %428 = vperm.xlu0 %427, %v305
      %v429 = vpop.permute.xlu0 %428
      %432 = vset.pattern.permute.xlu0 0
      %433 = vperm.xlu0 %432, %v306
      %v434 = vpop.permute.xlu0 %433
      %437 = vset.pattern.permute.xlu0 0
      %438 = vperm.xlu0 %437, %v307
      %v439 = vpop.permute.xlu0 %438
      %442 = vset.pattern.permute.xlu0 0
      %443 = vperm.xlu0 %442, %v308
      %v444 = vpop.permute.xlu0 %443
      %447 = vset.pattern.permute.xlu0 0
      %448 = vperm.xlu0 %447, %v309
      %v449 = vpop.permute.xlu0 %448
      %452 = vset.pattern.permute.xlu0 0
      %453 = vperm.xlu0 %452, %v310
      %v454 = vpop.permute.xlu0 %453
      %457 = vset.pattern.permute.xlu0 0
      %458 = vperm.xlu0 %457, %v311
      %v459 = vpop.permute.xlu0 %458
      %462 = vset.pattern.permute.xlu0 0
      %463 = vperm.xlu0 %462, %v312
      %v464 = vpop.permute.xlu0 %463
      %467 = vset.pattern.permute.xlu0 0
      %468 = vperm.xlu0 %467, %v313
      %v469 = vpop.permute.xlu0 %468
      %472 = vset.pattern.permute.xlu0 0
      %473 = vperm.xlu0 %472, %v314
      %v474 = vpop.permute.xlu0 %473
      %v477 = vlaneseq
      %v478 = vshrl.u32 %v477, 7
      %v479 = vsub.s32 0, %v478
      %v480 = vrot.slane %v315, %v479
      %v481 = vlaneseq
      %v482 = vshrl.u32 %v481, 7
      %v483 = vsub.s32 1, %v482
      %v484 = vrot.slane %v315, %v483
      %v487 = vmul.f32 %v319, %v480
      %v488 = vmul.f32 %v319, %v484
      %v489 = vmul.f32 %v324, %v480
      %v490 = vmul.f32 %v324, %v484
      %v491 = vmul.f32 %v329, %v480
      %v492 = vmul.f32 %v329, %v484
      %v493 = vmul.f32 %v334, %v480
      %v494 = vmul.f32 %v334, %v484
      %v495 = vmul.f32 %v339, %v480
      %v496 = vmul.f32 %v339, %v484
      %v497 = vmul.f32 %v344, %v480
      %v498 = vmul.f32 %v344, %v484
      %v499 = vmul.f32 %v349, %v480
      %v500 = vmul.f32 %v349, %v484
      %v501 = vmul.f32 %v354, %v480
      %v502 = vmul.f32 %v354, %v484
      %v503 = vmul.f32 %v359, %v480
      %v504 = vmul.f32 %v359, %v484
      %v505 = vmul.f32 %v364, %v480
      %v506 = vmul.f32 %v364, %v484
      %v507 = vmul.f32 %v369, %v480
      %v508 = vmul.f32 %v369, %v484
      %v509 = vmul.f32 %v374, %v480
      %v510 = vmul.f32 %v374, %v484
      %v511 = vmul.f32 %v379, %v480
      %v512 = vmul.f32 %v379, %v484
      %v513 = vmul.f32 %v384, %v480
      %v514 = vmul.f32 %v384, %v484
      %v515 = vmul.f32 %v389, %v480
      %v516 = vmul.f32 %v389, %v484
      %v517 = vmul.f32 %v394, %v480
      %v518 = vmul.f32 %v394, %v484
      %v519 = vmul.f32 %v399, %v480
      %v520 = vmul.f32 %v399, %v484
      %v521 = vmul.f32 %v404, %v480
      %v522 = vmul.f32 %v404, %v484
      %v523 = vmul.f32 %v409, %v480
      %v524 = vmul.f32 %v409, %v484
      %v525 = vmul.f32 %v414, %v480
      %v526 = vmul.f32 %v414, %v484
      %v527 = vmul.f32 %v419, %v480
      %v528 = vmul.f32 %v419, %v484
      %v529 = vmul.f32 %v424, %v480
      %v530 = vmul.f32 %v424, %v484
      %v531 = vmul.f32 %v429, %v480
      %v532 = vmul.f32 %v429, %v484
      %v533 = vmul.f32 %v434, %v480
      %v534 = vmul.f32 %v434, %v484
      %v535 = vmul.f32 %v439, %v480
      %v536 = vmul.f32 %v439, %v484
      %v537 = vmul.f32 %v444, %v480
      %v538 = vmul.f32 %v444, %v484
      %v539 = vmul.f32 %v449, %v480
      %v540 = vmul.f32 %v449, %v484
      %v541 = vmul.f32 %v454, %v480
      %v542 = vmul.f32 %v454, %v484
      %v543 = vmul.f32 %v459, %v480
      %v544 = vmul.f32 %v459, %v484
      %v545 = vmul.f32 %v464, %v480
      %v546 = vmul.f32 %v464, %v484
      %v547 = vmul.f32 %v469, %v480
      %v548 = vmul.f32 %v469, %v484
      %v549 = vmul.f32 %v474, %v480
      %v550 = vmul.f32 %v474, %v484
      %v551 = vld [vmem:[%s2] sm:$0x3]
      %v553 = vlaneseq
      %v554 = vshrl.u32 %v553, 7
      %v555 = vsub.s32 0, %v554
      %v556 = vrot.slane %v551, %v555
      %v557 = vlaneseq
      %v558 = vshrl.u32 %v557, 7
      %v559 = vsub.s32 1, %v558
      %v560 = vrot.slane %v551, %v559
      %v563 = vadd.f32 %v487, %v556
      %v564 = vadd.f32 %v488, %v560
      %v565 = vadd.f32 %v489, %v556
      %v566 = vadd.f32 %v490, %v560
      %v567 = vadd.f32 %v491, %v556
      %v568 = vadd.f32 %v492, %v560
      %v569 = vadd.f32 %v493, %v556
      %v570 = vadd.f32 %v494, %v560
      %v571 = vadd.f32 %v495, %v556
      %v572 = vadd.f32 %v496, %v560
      %v573 = vadd.f32 %v497, %v556
      %v574 = vadd.f32 %v498, %v560
      %v575 = vadd.f32 %v499, %v556
      %v576 = vadd.f32 %v500, %v560
      %v577 = vadd.f32 %v501, %v556
      %v578 = vadd.f32 %v502, %v560
      %v579 = vadd.f32 %v503, %v556
      %v580 = vadd.f32 %v504, %v560
      %v581 = vadd.f32 %v505, %v556
      %v582 = vadd.f32 %v506, %v560
      %v583 = vadd.f32 %v507, %v556
      %v584 = vadd.f32 %v508, %v560
      %v585 = vadd.f32 %v509, %v556
      %v586 = vadd.f32 %v510, %v560
      %v587 = vadd.f32 %v511, %v556
      %v588 = vadd.f32 %v512, %v560
      %v589 = vadd.f32 %v513, %v556
      %v590 = vadd.f32 %v514, %v560
      %v591 = vadd.f32 %v515, %v556
      %v592 = vadd.f32 %v516, %v560
      %v593 = vadd.f32 %v517, %v556
      %v594 = vadd.f32 %v518, %v560
      %v595 = vadd.f32 %v519, %v556
      %v596 = vadd.f32 %v520, %v560
      %v597 = vadd.f32 %v521, %v556
      %v598 = vadd.f32 %v522, %v560
      %v599 = vadd.f32 %v523, %v556
      %v600 = vadd.f32 %v524, %v560
      %v601 = vadd.f32 %v525, %v556
      %v602 = vadd.f32 %v526, %v560
      %v603 = vadd.f32 %v527, %v556
      %v604 = vadd.f32 %v528, %v560
      %v605 = vadd.f32 %v529, %v556
      %v606 = vadd.f32 %v530, %v560
      %v607 = vadd.f32 %v531, %v556
      %v608 = vadd.f32 %v532, %v560
      %v609 = vadd.f32 %v533, %v556
      %v610 = vadd.f32 %v534, %v560
      %v611 = vadd.f32 %v535, %v556
      %v612 = vadd.f32 %v536, %v560
      %v613 = vadd.f32 %v537, %v556
      %v614 = vadd.f32 %v538, %v560
      %v615 = vadd.f32 %v539, %v556
      %v616 = vadd.f32 %v540, %v560
      %v617 = vadd.f32 %v541, %v556
      %v618 = vadd.f32 %v542, %v560
      %v619 = vadd.f32 %v543, %v556
      %v620 = vadd.f32 %v544, %v560
      %v621 = vadd.f32 %v545, %v556
      %v622 = vadd.f32 %v546, %v560
      %v623 = vadd.f32 %v547, %v556
      %v624 = vadd.f32 %v548, %v560
      %v625 = vadd.f32 %v549, %v556
      %v626 = vadd.f32 %v550, %v560
      %v627 = vmax.f32 %v563, 0.0
      %v628 = vmax.f32 %v564, 0.0
      %v629 = vmax.f32 %v565, 0.0
      %v630 = vmax.f32 %v566, 0.0
      %v631 = vmax.f32 %v567, 0.0
      %v632 = vmax.f32 %v568, 0.0
      %v633 = vmax.f32 %v569, 0.0
      %v634 = vmax.f32 %v570, 0.0
      %v635 = vmax.f32 %v571, 0.0
      %v636 = vmax.f32 %v572, 0.0
      %v637 = vmax.f32 %v573, 0.0
      %v638 = vmax.f32 %v574, 0.0
      %v639 = vmax.f32 %v575, 0.0
      %v640 = vmax.f32 %v576, 0.0
      %v641 = vmax.f32 %v577, 0.0
      %v642 = vmax.f32 %v578, 0.0
      %v643 = vmax.f32 %v579, 0.0
      %v644 = vmax.f32 %v580, 0.0
      %v645 = vmax.f32 %v581, 0.0
      %v646 = vmax.f32 %v582, 0.0
      %v647 = vmax.f32 %v583, 0.0
      %v648 = vmax.f32 %v584, 0.0
      %v649 = vmax.f32 %v585, 0.0
      %v650 = vmax.f32 %v586, 0.0
      %v651 = vmax.f32 %v587, 0.0
      %v652 = vmax.f32 %v588, 0.0
      %v653 = vmax.f32 %v589, 0.0
      %v654 = vmax.f32 %v590, 0.0
      %v655 = vmax.f32 %v591, 0.0
      %v656 = vmax.f32 %v592, 0.0
      %v657 = vmax.f32 %v593, 0.0
      %v658 = vmax.f32 %v594, 0.0
      %v659 = vmax.f32 %v595, 0.0
      %v660 = vmax.f32 %v596, 0.0
      %v661 = vmax.f32 %v597, 0.0
      %v662 = vmax.f32 %v598, 0.0
      %v663 = vmax.f32 %v599, 0.0
      %v664 = vmax.f32 %v600, 0.0
      %v665 = vmax.f32 %v601, 0.0
      %v666 = vmax.f32 %v602, 0.0
      %v667 = vmax.f32 %v603, 0.0
      %v668 = vmax.f32 %v604, 0.0
      %v669 = vmax.f32 %v605, 0.0
      %v670 = vmax.f32 %v606, 0.0
      %v671 = vmax.f32 %v607, 0.0
      %v672 = vmax.f32 %v608, 0.0
      %v673 = vmax.f32 %v609, 0.0
      %v674 = vmax.f32 %v610, 0.0
      %v675 = vmax.f32 %v611, 0.0
      %v676 = vmax.f32 %v612, 0.0
      %v677 = vmax.f32 %v613, 0.0
      %v678 = vmax.f32 %v614, 0.0
      %v679 = vmax.f32 %v615, 0.0
      %v680 = vmax.f32 %v616, 0.0
      %v681 = vmax.f32 %v617, 0.0
      %v682 = vmax.f32 %v618, 0.0
      %v683 = vmax.f32 %v619, 0.0
      %v684 = vmax.f32 %v620, 0.0
      %v685 = vmax.f32 %v621, 0.0
      %v686 = vmax.f32 %v622, 0.0
      %v687 = vmax.f32 %v623, 0.0
      %v688 = vmax.f32 %v624, 0.0
      %v689 = vmax.f32 %v625, 0.0
      %v690 = vmax.f32 %v626, 0.0
      %v691 = vpack.c.bf16 %v629, %v627
      %v692 = vpack.c.bf16 %v630, %v628
      %v693 = vpack.c.bf16 %v633, %v631
      %v694 = vpack.c.bf16 %v634, %v632
      %v695 = vpack.c.bf16 %v637, %v635
      %v696 = vpack.c.bf16 %v638, %v636
      %v697 = vpack.c.bf16 %v641, %v639
      %v698 = vpack.c.bf16 %v642, %v640
      %v699 = vpack.c.bf16 %v645, %v643
      %v700 = vpack.c.bf16 %v646, %v644
      %v701 = vpack.c.bf16 %v649, %v647
      %v702 = vpack.c.bf16 %v650, %v648
      %v703 = vpack.c.bf16 %v653, %v651
      %v704 = vpack.c.bf16 %v654, %v652
      %v705 = vpack.c.bf16 %v657, %v655
      %v706 = vpack.c.bf16 %v658, %v656
      %v707 = vpack.c.bf16 %v661, %v659
      %v708 = vpack.c.bf16 %v662, %v660
      %v709 = vpack.c.bf16 %v665, %v663
      %v710 = vpack.c.bf16 %v666, %v664
      %v711 = vpack.c.bf16 %v669, %v667
      %v712 = vpack.c.bf16 %v670, %v668
      %v713 = vpack.c.bf16 %v673, %v671
      %v714 = vpack.c.bf16 %v674, %v672
      %v715 = vpack.c.bf16 %v677, %v675
      %v716 = vpack.c.bf16 %v678, %v676
      %v717 = vpack.c.bf16 %v681, %v679
      %v718 = vpack.c.bf16 %v682, %v680
      %v719 = vpack.c.bf16 %v685, %v683
      %v720 = vpack.c.bf16 %v686, %v684
      %v721 = vpack.c.bf16 %v689, %v687
      %v722 = vpack.c.bf16 %v690, %v688
      %v723 = vld [vmem:[%s3] sm:$0xff]
      %v724 = vld [vmem:[%s3 + $0x8] sm:$0xff]
      %v725 = vld [vmem:[%s3 + $0x10] sm:$0xff]
      %v726 = vld [vmem:[%s3 + $0x18] sm:$0xff]
      %v727 = vld [vmem:[%s3 + $0x20] sm:$0xff]
      %v728 = vld [vmem:[%s3 + $0x28] sm:$0xff]
      %v729 = vld [vmem:[%s3 + $0x30] sm:$0xff]
      %v730 = vld [vmem:[%s3 + $0x38] sm:$0xff]
      %v731 = vld [vmem:[%s3 + $0x40] sm:$0xff]
      %v732 = vld [vmem:[%s3 + $0x48] sm:$0xff]
      %v733 = vld [vmem:[%s3 + $0x50] sm:$0xff]
      %v734 = vld [vmem:[%s3 + $0x58] sm:$0xff]
      %v735 = vld [vmem:[%s3 + $0x60] sm:$0xff]
      %v736 = vld [vmem:[%s3 + $0x68] sm:$0xff]
      %v737 = vld [vmem:[%s3 + $0x70] sm:$0xff]
      %v738 = vld [vmem:[%s3 + $0x78] sm:$0xff]
      %v739 = vld [vmem:[%s3 + $0x80] sm:$0xff]
      %v740 = vld [vmem:[%s3 + $0x88] sm:$0xff]
      %v741 = vld [vmem:[%s3 + $0x90] sm:$0xff]
      %v742 = vld [vmem:[%s3 + $0x98] sm:$0xff]
      %v743 = vld [vmem:[%s3 + $0xa0] sm:$0xff]
      %v744 = vld [vmem:[%s3 + $0xa8] sm:$0xff]
      %v745 = vld [vmem:[%s3 + $0xb0] sm:$0xff]
      %v746 = vld [vmem:[%s3 + $0xb8] sm:$0xff]
      %v747 = vld [vmem:[%s3 + $0xc0] sm:$0xff]
      %v748 = vld [vmem:[%s3 + $0xc8] sm:$0xff]
      %v749 = vld [vmem:[%s3 + $0xd0] sm:$0xff]
      %v750 = vld [vmem:[%s3 + $0xd8] sm:$0xff]
      %v751 = vld [vmem:[%s3 + $0xe0] sm:$0xff]
      %v752 = vld [vmem:[%s3 + $0xe8] sm:$0xff]
      %v753 = vld [vmem:[%s3 + $0xf0] sm:$0xff]
      %v754 = vld [vmem:[%s3 + $0xf8] sm:$0xff]
      %v755 = vld [vmem:[%s4] sm:$0x3]
      %v757 = vlaneseq
      %v758 = vshrl.u32 %v757, 7
      %v759 = vsub.s32 0, %v758
      %v760 = vrot.slane %v755, %v759
      %v761 = vlaneseq
      %v762 = vshrl.u32 %v761, 7
      %v763 = vsub.s32 1, %v762
      %v764 = vrot.slane %v755, %v763
      %v799 = vunpack.c.l.b16 %v723
      %v800 = vunpack.c.h.b16 %v723
      %v801 = vunpack.c.l.b16 %v724
      %v802 = vunpack.c.h.b16 %v724
      %v803 = vunpack.c.l.b16 %v725
      %v804 = vunpack.c.h.b16 %v725
      %v805 = vunpack.c.l.b16 %v726
      %v806 = vunpack.c.h.b16 %v726
      %v807 = vunpack.c.l.b16 %v727
      %v808 = vunpack.c.h.b16 %v727
      %v809 = vunpack.c.l.b16 %v728
      %v810 = vunpack.c.h.b16 %v728
      %v811 = vunpack.c.l.b16 %v729
      %v812 = vunpack.c.h.b16 %v729
      %v813 = vunpack.c.l.b16 %v730
      %v814 = vunpack.c.h.b16 %v730
      %v815 = vunpack.c.l.b16 %v731
      %v816 = vunpack.c.h.b16 %v731
      %v817 = vunpack.c.l.b16 %v732
      %v818 = vunpack.c.h.b16 %v732
      %v819 = vunpack.c.l.b16 %v733
      %v820 = vunpack.c.h.b16 %v733
      %v821 = vunpack.c.l.b16 %v734
      %v822 = vunpack.c.h.b16 %v734
      %v823 = vunpack.c.l.b16 %v735
      %v824 = vunpack.c.h.b16 %v735
      %v825 = vunpack.c.l.b16 %v736
      %v826 = vunpack.c.h.b16 %v736
      %v827 = vunpack.c.l.b16 %v737
      %v828 = vunpack.c.h.b16 %v737
      %v829 = vunpack.c.l.b16 %v738
      %v830 = vunpack.c.h.b16 %v738
      %v831 = vunpack.c.l.b16 %v739
      %v832 = vunpack.c.h.b16 %v739
      %v833 = vunpack.c.l.b16 %v740
      %v834 = vunpack.c.h.b16 %v740
      %v835 = vunpack.c.l.b16 %v741
      %v836 = vunpack.c.h.b16 %v741
      %v837 = vunpack.c.l.b16 %v742
      %v838 = vunpack.c.h.b16 %v742
      %v839 = vunpack.c.l.b16 %v743
      %v840 = vunpack.c.h.b16 %v743
      %v841 = vunpack.c.l.b16 %v744
      %v842 = vunpack.c.h.b16 %v744
      %v843 = vunpack.c.l.b16 %v745
      %v844 = vunpack.c.h.b16 %v745
      %v845 = vunpack.c.l.b16 %v746
      %v846 = vunpack.c.h.b16 %v746
      %v847 = vunpack.c.l.b16 %v747
      %v848 = vunpack.c.h.b16 %v747
      %v849 = vunpack.c.l.b16 %v748
      %v850 = vunpack.c.h.b16 %v748
      %v851 = vunpack.c.l.b16 %v749
      %v852 = vunpack.c.h.b16 %v749
      %v853 = vunpack.c.l.b16 %v750
      %v854 = vunpack.c.h.b16 %v750
      %v855 = vunpack.c.l.b16 %v751
      %v856 = vunpack.c.h.b16 %v751
      %v857 = vunpack.c.l.b16 %v752
      %v858 = vunpack.c.h.b16 %v752
      %v859 = vunpack.c.l.b16 %v753
      %v860 = vunpack.c.h.b16 %v753
      %v861 = vunpack.c.l.b16 %v754
      %v862 = vunpack.c.h.b16 %v754
      %v863 = vpack.c.b16 %v801, %v799
      %v864 = vpack.c.b16 %v802, %v800
      %v865 = vpack.c.b16 %v805, %v803
      %v866 = vpack.c.b16 %v806, %v804
      %v867 = vpack.c.b16 %v809, %v807
      %v868 = vpack.c.b16 %v810, %v808
      %v869 = vpack.c.b16 %v813, %v811
      %v870 = vpack.c.b16 %v814, %v812
      %v871 = vpack.c.b16 %v817, %v815
      %v872 = vpack.c.b16 %v818, %v816
      %v873 = vpack.c.b16 %v821, %v819
      %v874 = vpack.c.b16 %v822, %v820
      %v875 = vpack.c.b16 %v825, %v823
      %v876 = vpack.c.b16 %v826, %v824
      %v877 = vpack.c.b16 %v829, %v827
      %v878 = vpack.c.b16 %v830, %v828
      %v879 = vpack.c.b16 %v833, %v831
      %v880 = vpack.c.b16 %v834, %v832
      %v881 = vpack.c.b16 %v837, %v835
      %v882 = vpack.c.b16 %v838, %v836
      %v883 = vpack.c.b16 %v841, %v839
      %v884 = vpack.c.b16 %v842, %v840
      %v885 = vpack.c.b16 %v845, %v843
      %v886 = vpack.c.b16 %v846, %v844
      %v887 = vpack.c.b16 %v849, %v847
      %v888 = vpack.c.b16 %v850, %v848
      %v889 = vpack.c.b16 %v853, %v851
      %v890 = vpack.c.b16 %v854, %v852
      %v891 = vpack.c.b16 %v857, %v855
      %v892 = vpack.c.b16 %v858, %v856
      %v893 = vpack.c.b16 %v861, %v859
      %v894 = vpack.c.b16 %v862, %v860
      %927 = vmatprep.subr.bf16.mxu0 %v864
      %928 = vmatpush1.bf16.msra.mxu0 %v863
      %929 = vmatprep.subr.bf16.mxu0 %v866
      %930 = vmatpush1.bf16.msra.mxu0 %v865
      %931 = vmatprep.subr.bf16.mxu0 %v868
      %932 = vmatpush1.bf16.msra.mxu0 %v867
      %933 = vmatprep.subr.bf16.mxu0 %v870
      %934 = vmatpush1.bf16.msra.mxu0 %v869
      %935 = vmatprep.subr.bf16.mxu0 %v872
      %936 = vmatpush1.bf16.msra.mxu0 %v871
      %937 = vmatprep.subr.bf16.mxu0 %v874
      %938 = vmatpush1.bf16.msra.mxu0 %v873
      %939 = vmatprep.subr.bf16.mxu0 %v876
      %940 = vmatpush1.bf16.msra.mxu0 %v875
      %941 = vmatprep.subr.bf16.mxu0 %v878
      %942 = vmatpush1.bf16.msra.mxu0 %v877
      %943 = vmatprep.subr.bf16.mxu0 %v880
      %944 = vmatpush1.bf16.msra.mxu0 %v879
      %945 = vmatprep.subr.bf16.mxu0 %v882
      %946 = vmatpush1.bf16.msra.mxu0 %v881
      %947 = vmatprep.subr.bf16.mxu0 %v884
      %948 = vmatpush1.bf16.msra.mxu0 %v883
      %949 = vmatprep.subr.bf16.mxu0 %v886
      %950 = vmatpush1.bf16.msra.mxu0 %v885
      %951 = vmatprep.subr.bf16.mxu0 %v888
      %952 = vmatpush1.bf16.msra.mxu0 %v887
      %953 = vmatprep.subr.bf16.mxu0 %v890
      %954 = vmatpush1.bf16.msra.mxu0 %v889
      %955 = vmatprep.subr.bf16.mxu0 %v892
      %956 = vmatpush1.bf16.msra.mxu0 %v891
      %957 = vmatprep.subr.bf16.mxu0 %v894
      %958 = vmatpush1.bf16.msra.mxu0 %v893
      %959 = vmatprep.mubr.bf16.mxu0 %v692
      %960 = vmatmul.mubr.bf16.gmra.mrb[0].mxu0 %v691
      %v961 = vpop.f32.mrb[0].mxu0
      %v962 = vadd.f32 %v760, %v961
      %v963 = vpop.f32.mrb[0].mxu0
      %v964 = vadd.f32 %v764, %v963
      %v965 = vpop.f32.mrb[0].mxu0
      %v966 = vadd.f32 %v760, %v965
      %v967 = vpop.f32.mrb[0].mxu0
      %v968 = vadd.f32 %v764, %v967
      %969 = vmatprep.mubr.bf16.mxu0 %v694
      %970 = vmatmul.mubr.bf16.gmra.mrb[0].mxu0 %v693
      %v971 = vpop.f32.mrb[0].mxu0
      %v972 = vadd.f32 %v760, %v971
      %v973 = vpop.f32.mrb[0].mxu0
      %v974 = vadd.f32 %v764, %v973
      %v975 = vpop.f32.mrb[0].mxu0
      %v976 = vadd.f32 %v760, %v975
      %v977 = vpop.f32.mrb[0].mxu0
      %v978 = vadd.f32 %v764, %v977
      %979 = vmatprep.mubr.bf16.mxu0 %v696
      %980 = vmatmul.mubr.bf16.gmra.mrb[0].mxu0 %v695
      %v981 = vpop.f32.mrb[0].mxu0
      %v982 = vadd.f32 %v760, %v981
      %v983 = vpop.f32.mrb[0].mxu0
      %v984 = vadd.f32 %v764, %v983
      %v985 = vpop.f32.mrb[0].mxu0
      %v986 = vadd.f32 %v760, %v985
      %v987 = vpop.f32.mrb[0].mxu0
      %v988 = vadd.f32 %v764, %v987
      %989 = vmatprep.mubr.bf16.mxu0 %v698
      %990 = vmatmul.mubr.bf16.gmra.mrb[0].mxu0 %v697
      %v991 = vpop.f32.mrb[0].mxu0
      %v992 = vadd.f32 %v760, %v991
      %v993 = vpop.f32.mrb[0].mxu0
      %v994 = vadd.f32 %v764, %v993
      %v995 = vpop.f32.mrb[0].mxu0
      %v996 = vadd.f32 %v760, %v995
      %v997 = vpop.f32.mrb[0].mxu0
      %v998 = vadd.f32 %v764, %v997
      %999 = vmatprep.mubr.bf16.mxu0 %v700
      %1000 = vmatmul.mubr.bf16.gmra.mrb[0].mxu0 %v699
      %v1001 = vpop.f32.mrb[0].mxu0
      %v1002 = vadd.f32 %v760, %v1001
      %v1003 = vpop.f32.mrb[0].mxu0
      %v1004 = vadd.f32 %v764, %v1003
      %v1005 = vpop.f32.mrb[0].mxu0
      %v1006 = vadd.f32 %v760, %v1005
      %v1007 = vpop.f32.mrb[0].mxu0
      %v1008 = vadd.f32 %v764, %v1007
      %1009 = vmatprep.mubr.bf16.mxu0 %v702
      %1010 = vmatmul.mubr.bf16.gmra.mrb[0].mxu0 %v701
      %v1011 = vpop.f32.mrb[0].mxu0
      %v1012 = vadd.f32 %v760, %v1011
      %v1013 = vpop.f32.mrb[0].mxu0
      %v1014 = vadd.f32 %v764, %v1013
      %v1015 = vpop.f32.mrb[0].mxu0
      %v1016 = vadd.f32 %v760, %v1015
      %v1017 = vpop.f32.mrb[0].mxu0
      %v1018 = vadd.f32 %v764, %v1017
      %1019 = vmatprep.mubr.bf16.mxu0 %v704
      %1020 = vmatmul.mubr.bf16.gmra.mrb[0].mxu0 %v703
      %v1021 = vpop.f32.mrb[0].mxu0
      %v1022 = vadd.f32 %v760, %v1021
      %v1023 = vpop.f32.mrb[0].mxu0
      %v1024 = vadd.f32 %v764, %v1023
      %v1025 = vpop.f32.mrb[0].mxu0
      %v1026 = vadd.f32 %v760, %v1025
      %v1027 = vpop.f32.mrb[0].mxu0
      %v1028 = vadd.f32 %v764, %v1027
      %1029 = vmatprep.mubr.bf16.mxu0 %v706
      %1030 = vmatmul.mubr.bf16.gmra.mrb[0].mxu0 %v705
      %v1031 = vpop.f32.mrb[0].mxu0
      %v1032 = vadd.f32 %v760, %v1031
      %v1033 = vpop.f32.mrb[0].mxu0
      %v1034 = vadd.f32 %v764, %v1033
      %v1035 = vpop.f32.mrb[0].mxu0
      %v1036 = vadd.f32 %v760, %v1035
      %v1037 = vpop.f32.mrb[0].mxu0
      %v1038 = vadd.f32 %v764, %v1037
      %1039 = vmatprep.mubr.bf16.mxu0 %v708
      %1040 = vmatmul.mubr.bf16.gmra.mrb[0].mxu0 %v707
      %v1041 = vpop.f32.mrb[0].mxu0
      %v1042 = vadd.f32 %v760, %v1041
      %v1043 = vpop.f32.mrb[0].mxu0
      %v1044 = vadd.f32 %v764, %v1043
      %v1045 = vpop.f32.mrb[0].mxu0
      %v1046 = vadd.f32 %v760, %v1045
      %v1047 = vpop.f32.mrb[0].mxu0
      %v1048 = vadd.f32 %v764, %v1047
      %1049 = vmatprep.mubr.bf16.mxu0 %v710
      %1050 = vmatmul.mubr.bf16.gmra.mrb[0].mxu0 %v709
      %v1051 = vpop.f32.mrb[0].mxu0
      %v1052 = vadd.f32 %v760, %v1051
      %v1053 = vpop.f32.mrb[0].mxu0
      %v1054 = vadd.f32 %v764, %v1053
      %v1055 = vpop.f32.mrb[0].mxu0
      %v1056 = vadd.f32 %v760, %v1055
      %v1057 = vpop.f32.mrb[0].mxu0
      %v1058 = vadd.f32 %v764, %v1057
      %1059 = vmatprep.mubr.bf16.mxu0 %v712
      %1060 = vmatmul.mubr.bf16.gmra.mrb[0].mxu0 %v711
      %v1061 = vpop.f32.mrb[0].mxu0
      %v1062 = vadd.f32 %v760, %v1061
      %v1063 = vpop.f32.mrb[0].mxu0
      %v1064 = vadd.f32 %v764, %v1063
      %v1065 = vpop.f32.mrb[0].mxu0
      %v1066 = vadd.f32 %v760, %v1065
      %v1067 = vpop.f32.mrb[0].mxu0
      %v1068 = vadd.f32 %v764, %v1067
      %1069 = vmatprep.mubr.bf16.mxu0 %v714
      %1070 = vmatmul.mubr.bf16.gmra.mrb[0].mxu0 %v713
      %v1071 = vpop.f32.mrb[0].mxu0
      %v1072 = vadd.f32 %v760, %v1071
      %v1073 = vpop.f32.mrb[0].mxu0
      %v1074 = vadd.f32 %v764, %v1073
      %v1075 = vpop.f32.mrb[0].mxu0
      %v1076 = vadd.f32 %v760, %v1075
      %v1077 = vpop.f32.mrb[0].mxu0
      %v1078 = vadd.f32 %v764, %v1077
      %1079 = vmatprep.mubr.bf16.mxu0 %v716
      %1080 = vmatmul.mubr.bf16.gmra.mrb[0].mxu0 %v715
      %v1081 = vpop.f32.mrb[0].mxu0
      %v1082 = vadd.f32 %v760, %v1081
      %v1083 = vpop.f32.mrb[0].mxu0
      %v1084 = vadd.f32 %v764, %v1083
      %v1085 = vpop.f32.mrb[0].mxu0
      %v1086 = vadd.f32 %v760, %v1085
      %v1087 = vpop.f32.mrb[0].mxu0
      %v1088 = vadd.f32 %v764, %v1087
      %1089 = vmatprep.mubr.bf16.mxu0 %v718
      %1090 = vmatmul.mubr.bf16.gmra.mrb[0].mxu0 %v717
      %v1091 = vpop.f32.mrb[0].mxu0
      %v1092 = vadd.f32 %v760, %v1091
      %v1093 = vpop.f32.mrb[0].mxu0
      %v1094 = vadd.f32 %v764, %v1093
      %v1095 = vpop.f32.mrb[0].mxu0
      %v1096 = vadd.f32 %v760, %v1095
      %v1097 = vpop.f32.mrb[0].mxu0
      %v1098 = vadd.f32 %v764, %v1097
      %1099 = vmatprep.mubr.bf16.mxu0 %v720
      %1100 = vmatmul.mubr.bf16.gmra.mrb[0].mxu0 %v719
      %v1101 = vpop.f32.mrb[0].mxu0
      %v1102 = vadd.f32 %v760, %v1101
      %v1103 = vpop.f32.mrb[0].mxu0
      %v1104 = vadd.f32 %v764, %v1103
      %v1105 = vpop.f32.mrb[0].mxu0
      %v1106 = vadd.f32 %v760, %v1105
      %v1107 = vpop.f32.mrb[0].mxu0
      %v1108 = vadd.f32 %v764, %v1107
      %1109 = vmatprep.mubr.bf16.mxu0 %v722
      %1110 = vmatmul.mubr.bf16.gmra.mrb[0].mxu0 %v721
      %v1111 = vpop.f32.mrb[0].mxu0
      %v1112 = vadd.f32 %v760, %v1111
      %v1113 = vpop.f32.mrb[0].mxu0
      %v1114 = vadd.f32 %v764, %v1113
      %v1115 = vpop.f32.mrb[0].mxu0
      %v1116 = vadd.f32 %v760, %v1115
      %v1117 = vpop.f32.mrb[0].mxu0
      %v1118 = vadd.f32 %v764, %v1117
      %1119 = vdwg.mxu0
      %v1120 = vmax.f32 %v962, 0.0
      %v1121 = vmax.f32 %v964, 0.0
      %v1122 = vmax.f32 %v966, 0.0
      %v1123 = vmax.f32 %v968, 0.0
      %v1124 = vmax.f32 %v972, 0.0
      %v1125 = vmax.f32 %v974, 0.0
      %v1126 = vmax.f32 %v976, 0.0
      %v1127 = vmax.f32 %v978, 0.0
      %v1128 = vmax.f32 %v982, 0.0
      %v1129 = vmax.f32 %v984, 0.0
      %v1130 = vmax.f32 %v986, 0.0
      %v1131 = vmax.f32 %v988, 0.0
      %v1132 = vmax.f32 %v992, 0.0
      %v1133 = vmax.f32 %v994, 0.0
      %v1134 = vmax.f32 %v996, 0.0
      %v1135 = vmax.f32 %v998, 0.0
      %v1136 = vmax.f32 %v1002, 0.0
      %v1137 = vmax.f32 %v1004, 0.0
      %v1138 = vmax.f32 %v1006, 0.0
      %v1139 = vmax.f32 %v1008, 0.0
      %v1140 = vmax.f32 %v1012, 0.0
      %v1141 = vmax.f32 %v1014, 0.0
      %v1142 = vmax.f32 %v1016, 0.0
      %v1143 = vmax.f32 %v1018, 0.0
      %v1144 = vmax.f32 %v1022, 0.0
      %v1145 = vmax.f32 %v1024, 0.0
      %v1146 = vmax.f32 %v1026, 0.0
      %v1147 = vmax.f32 %v1028, 0.0
      %v1148 = vmax.f32 %v1032, 0.0
      %v1149 = vmax.f32 %v1034, 0.0
      %v1150 = vmax.f32 %v1036, 0.0
      %v1151 = vmax.f32 %v1038, 0.0
      %v1152 = vmax.f32 %v1042, 0.0
      %v1153 = vmax.f32 %v1044, 0.0
      %v1154 = vmax.f32 %v1046, 0.0
      %v1155 = vmax.f32 %v1048, 0.0
      %v1156 = vmax.f32 %v1052, 0.0
      %v1157 = vmax.f32 %v1054, 0.0
      %v1158 = vmax.f32 %v1056, 0.0
      %v1159 = vmax.f32 %v1058, 0.0
      %v1160 = vmax.f32 %v1062, 0.0
      %v1161 = vmax.f32 %v1064, 0.0
      %v1162 = vmax.f32 %v1066, 0.0
      %v1163 = vmax.f32 %v1068, 0.0
      %v1164 = vmax.f32 %v1072, 0.0
      %v1165 = vmax.f32 %v1074, 0.0
      %v1166 = vmax.f32 %v1076, 0.0
      %v1167 = vmax.f32 %v1078, 0.0
      %v1168 = vmax.f32 %v1082, 0.0
      %v1169 = vmax.f32 %v1084, 0.0
      %v1170 = vmax.f32 %v1086, 0.0
      %v1171 = vmax.f32 %v1088, 0.0
      %v1172 = vmax.f32 %v1092, 0.0
      %v1173 = vmax.f32 %v1094, 0.0
      %v1174 = vmax.f32 %v1096, 0.0
      %v1175 = vmax.f32 %v1098, 0.0
      %v1176 = vmax.f32 %v1102, 0.0
      %v1177 = vmax.f32 %v1104, 0.0
      %v1178 = vmax.f32 %v1106, 0.0
      %v1179 = vmax.f32 %v1108, 0.0
      %v1180 = vmax.f32 %v1112, 0.0
      %v1181 = vmax.f32 %v1114, 0.0
      %v1182 = vmax.f32 %v1116, 0.0
      %v1183 = vmax.f32 %v1118, 0.0
      %v1184 = vld [vmem:[%s5] sm:$0x3]
      %v1186 = vlaneseq
      %v1187 = vshrl.u32 %v1186, 7
      %v1188 = vsub.s32 0, %v1187
      %v1189 = vrot.slane %v1184, %v1188
      %v1190 = vlaneseq
      %v1191 = vshrl.u32 %v1190, 7
      %v1192 = vsub.s32 1, %v1191
      %v1193 = vrot.slane %v1184, %v1192
      %v1196 = vmul.f32 %v1120, %v1189
      %v1197 = vmul.f32 %v1121, %v1193
      %v1198 = vmul.f32 %v1122, %v1189
      %v1199 = vmul.f32 %v1123, %v1193
      %v1200 = vmul.f32 %v1124, %v1189
      %v1201 = vmul.f32 %v1125, %v1193
      %v1202 = vmul.f32 %v1126, %v1189
      %v1203 = vmul.f32 %v1127, %v1193
      %v1204 = vmul.f32 %v1128, %v1189
      %v1205 = vmul.f32 %v1129, %v1193
      %v1206 = vmul.f32 %v1130, %v1189
      %v1207 = vmul.f32 %v1131, %v1193
      %v1208 = vmul.f32 %v1132, %v1189
      %v1209 = vmul.f32 %v1133, %v1193
      %v1210 = vmul.f32 %v1134, %v1189
      %v1211 = vmul.f32 %v1135, %v1193
      %v1212 = vmul.f32 %v1136, %v1189
      %v1213 = vmul.f32 %v1137, %v1193
      %v1214 = vmul.f32 %v1138, %v1189
      %v1215 = vmul.f32 %v1139, %v1193
      %v1216 = vmul.f32 %v1140, %v1189
      %v1217 = vmul.f32 %v1141, %v1193
      %v1218 = vmul.f32 %v1142, %v1189
      %v1219 = vmul.f32 %v1143, %v1193
      %v1220 = vmul.f32 %v1144, %v1189
      %v1221 = vmul.f32 %v1145, %v1193
      %v1222 = vmul.f32 %v1146, %v1189
      %v1223 = vmul.f32 %v1147, %v1193
      %v1224 = vmul.f32 %v1148, %v1189
      %v1225 = vmul.f32 %v1149, %v1193
      %v1226 = vmul.f32 %v1150, %v1189
      %v1227 = vmul.f32 %v1151, %v1193
      %v1228 = vmul.f32 %v1152, %v1189
      %v1229 = vmul.f32 %v1153, %v1193
      %v1230 = vmul.f32 %v1154, %v1189
      %v1231 = vmul.f32 %v1155, %v1193
      %v1232 = vmul.f32 %v1156, %v1189
      %v1233 = vmul.f32 %v1157, %v1193
      %v1234 = vmul.f32 %v1158, %v1189
      %v1235 = vmul.f32 %v1159, %v1193
      %v1236 = vmul.f32 %v1160, %v1189
      %v1237 = vmul.f32 %v1161, %v1193
      %v1238 = vmul.f32 %v1162, %v1189
      %v1239 = vmul.f32 %v1163, %v1193
      %v1240 = vmul.f32 %v1164, %v1189
      %v1241 = vmul.f32 %v1165, %v1193
      %v1242 = vmul.f32 %v1166, %v1189
      %v1243 = vmul.f32 %v1167, %v1193
      %v1244 = vmul.f32 %v1168, %v1189
      %v1245 = vmul.f32 %v1169, %v1193
      %v1246 = vmul.f32 %v1170, %v1189
      %v1247 = vmul.f32 %v1171, %v1193
      %v1248 = vmul.f32 %v1172, %v1189
      %v1249 = vmul.f32 %v1173, %v1193
      %v1250 = vmul.f32 %v1174, %v1189
      %v1251 = vmul.f32 %v1175, %v1193
      %v1252 = vmul.f32 %v1176, %v1189
      %v1253 = vmul.f32 %v1177, %v1193
      %v1254 = vmul.f32 %v1178, %v1189
      %v1255 = vmul.f32 %v1179, %v1193
      %v1256 = vmul.f32 %v1180, %v1189
      %v1257 = vmul.f32 %v1181, %v1193
      %v1258 = vmul.f32 %v1182, %v1189
      %v1259 = vmul.f32 %v1183, %v1193
      %v1260 = vadd.f32 %v1196, %v1197
      %1261 = vadd.xlane.f32.xlu0 %v1260
      %v1262 = vpop.xlane.xlu0 %1261
      %v1263 = vadd.f32 %v1198, %v1199
      %1264 = vadd.xlane.f32.xlu0 %v1263
      %v1265 = vpop.xlane.xlu0 %1264
      %v1266 = vadd.f32 %v1200, %v1201
      %1267 = vadd.xlane.f32.xlu0 %v1266
      %v1268 = vpop.xlane.xlu0 %1267
      %v1269 = vadd.f32 %v1202, %v1203
      %1270 = vadd.xlane.f32.xlu0 %v1269
      %v1271 = vpop.xlane.xlu0 %1270
      %v1272 = vadd.f32 %v1204, %v1205
      %1273 = vadd.xlane.f32.xlu0 %v1272
      %v1274 = vpop.xlane.xlu0 %1273
      %v1275 = vadd.f32 %v1206, %v1207
      %1276 = vadd.xlane.f32.xlu0 %v1275
      %v1277 = vpop.xlane.xlu0 %1276
      %v1278 = vadd.f32 %v1208, %v1209
      %1279 = vadd.xlane.f32.xlu0 %v1278
      %v1280 = vpop.xlane.xlu0 %1279
      %v1281 = vadd.f32 %v1210, %v1211
      %1282 = vadd.xlane.f32.xlu0 %v1281
      %v1283 = vpop.xlane.xlu0 %1282
      %v1284 = vadd.f32 %v1212, %v1213
      %1285 = vadd.xlane.f32.xlu0 %v1284
      %v1286 = vpop.xlane.xlu0 %1285
      %v1287 = vadd.f32 %v1214, %v1215
      %1288 = vadd.xlane.f32.xlu0 %v1287
      %v1289 = vpop.xlane.xlu0 %1288
      %v1290 = vadd.f32 %v1216, %v1217
      %1291 = vadd.xlane.f32.xlu0 %v1290
      %v1292 = vpop.xlane.xlu0 %1291
      %v1293 = vadd.f32 %v1218, %v1219
      %1294 = vadd.xlane.f32.xlu0 %v1293
      %v1295 = vpop.xlane.xlu0 %1294
      %v1296 = vadd.f32 %v1220, %v1221
      %1297 = vadd.xlane.f32.xlu0 %v1296
      %v1298 = vpop.xlane.xlu0 %1297
      %v1299 = vadd.f32 %v1222, %v1223
      %1300 = vadd.xlane.f32.xlu0 %v1299
      %v1301 = vpop.xlane.xlu0 %1300
      %v1302 = vadd.f32 %v1224, %v1225
      %1303 = vadd.xlane.f32.xlu0 %v1302
      %v1304 = vpop.xlane.xlu0 %1303
      %v1305 = vadd.f32 %v1226, %v1227
      %1306 = vadd.xlane.f32.xlu0 %v1305
      %v1307 = vpop.xlane.xlu0 %1306
      %v1308 = vadd.f32 %v1228, %v1229
      %1309 = vadd.xlane.f32.xlu0 %v1308
      %v1310 = vpop.xlane.xlu0 %1309
      %v1311 = vadd.f32 %v1230, %v1231
      %1312 = vadd.xlane.f32.xlu0 %v1311
      %v1313 = vpop.xlane.xlu0 %1312
      %v1314 = vadd.f32 %v1232, %v1233
      %1315 = vadd.xlane.f32.xlu0 %v1314
      %v1316 = vpop.xlane.xlu0 %1315
      %v1317 = vadd.f32 %v1234, %v1235
      %1318 = vadd.xlane.f32.xlu0 %v1317
      %v1319 = vpop.xlane.xlu0 %1318
      %v1320 = vadd.f32 %v1236, %v1237
      %1321 = vadd.xlane.f32.xlu0 %v1320
      %v1322 = vpop.xlane.xlu0 %1321
      %v1323 = vadd.f32 %v1238, %v1239
      %1324 = vadd.xlane.f32.xlu0 %v1323
      %v1325 = vpop.xlane.xlu0 %1324
      %v1326 = vadd.f32 %v1240, %v1241
      %1327 = vadd.xlane.f32.xlu0 %v1326
      %v1328 = vpop.xlane.xlu0 %1327
      %v1329 = vadd.f32 %v1242, %v1243
      %1330 = vadd.xlane.f32.xlu0 %v1329
      %v1331 = vpop.xlane.xlu0 %1330
      %v1332 = vadd.f32 %v1244, %v1245
      %1333 = vadd.xlane.f32.xlu0 %v1332
      %v1334 = vpop.xlane.xlu0 %1333
      %v1335 = vadd.f32 %v1246, %v1247
      %1336 = vadd.xlane.f32.xlu0 %v1335
      %v1337 = vpop.xlane.xlu0 %1336
      %v1338 = vadd.f32 %v1248, %v1249
      %1339 = vadd.xlane.f32.xlu0 %v1338
      %v1340 = vpop.xlane.xlu0 %1339
      %v1341 = vadd.f32 %v1250, %v1251
      %1342 = vadd.xlane.f32.xlu0 %v1341
      %v1343 = vpop.xlane.xlu0 %1342
      %v1344 = vadd.f32 %v1252, %v1253
      %1345 = vadd.xlane.f32.xlu0 %v1344
      %v1346 = vpop.xlane.xlu0 %1345
      %v1347 = vadd.f32 %v1254, %v1255
      %1348 = vadd.xlane.f32.xlu0 %v1347
      %v1349 = vpop.xlane.xlu0 %1348
      %v1350 = vadd.f32 %v1256, %v1257
      %1351 = vadd.xlane.f32.xlu0 %v1350
      %v1352 = vpop.xlane.xlu0 %1351
      %v1353 = vadd.f32 %v1258, %v1259
      %1354 = vadd.xlane.f32.xlu0 %v1353
      %v1355 = vpop.xlane.xlu0 %1354
      %s1356 = sld [smem:[#allocation2]]
      %v1357 = vstv %s1356
      %v1358 = vadd.f32 %v1262, %v1357
      %v1359 = vadd.f32 %v1265, %v1357
      %v1360 = vadd.f32 %v1268, %v1357
      %v1361 = vadd.f32 %v1271, %v1357
      %v1362 = vadd.f32 %v1274, %v1357
      %v1363 = vadd.f32 %v1277, %v1357
      %v1364 = vadd.f32 %v1280, %v1357
      %v1365 = vadd.f32 %v1283, %v1357
      %v1366 = vadd.f32 %v1286, %v1357
      %v1367 = vadd.f32 %v1289, %v1357
      %v1368 = vadd.f32 %v1292, %v1357
      %v1369 = vadd.f32 %v1295, %v1357
      %v1370 = vadd.f32 %v1298, %v1357
      %v1371 = vadd.f32 %v1301, %v1357
      %v1372 = vadd.f32 %v1304, %v1357
      %v1373 = vadd.f32 %v1307, %v1357
      %v1374 = vadd.f32 %v1310, %v1357
      %v1375 = vadd.f32 %v1313, %v1357
      %v1376 = vadd.f32 %v1316, %v1357
      %v1377 = vadd.f32 %v1319, %v1357
      %v1378 = vadd.f32 %v1322, %v1357
      %v1379 = vadd.f32 %v1325, %v1357
      %v1380 = vadd.f32 %v1328, %v1357
      %v1381 = vadd.f32 %v1331, %v1357
      %v1382 = vadd.f32 %v1334, %v1357
      %v1383 = vadd.f32 %v1337, %v1357
      %v1384 = vadd.f32 %v1340, %v1357
      %v1385 = vadd.f32 %v1343, %v1357
      %v1386 = vadd.f32 %v1346, %v1357
      %v1387 = vadd.f32 %v1349, %v1357
      %v1388 = vadd.f32 %v1352, %v1357
      %v1389 = vadd.f32 %v1355, %v1357
      %vm1390 = vcmask 7168
      %1391 = vst.msk [vmem:[%s281] sm:$0xff] %vm1390, %v1358
      %1392 = vst.msk [vmem:[%s281 + $0x8] sm:$0xff] %vm1390, %v1359
      %1393 = vst.msk [vmem:[%s281 + $0x10] sm:$0xff] %vm1390, %v1360
      %1394 = vst.msk [vmem:[%s281 + $0x18] sm:$0xff] %vm1390, %v1361
      %1395 = vst.msk [vmem:[%s281 + $0x20] sm:$0xff] %vm1390, %v1362
      %1396 = vst.msk [vmem:[%s281 + $0x28] sm:$0xff] %vm1390, %v1363
      %1397 = vst.msk [vmem:[%s281 + $0x30] sm:$0xff] %vm1390, %v1364
      %1398 = vst.msk [vmem:[%s281 + $0x38] sm:$0xff] %vm1390, %v1365
      %1399 = vst.msk [vmem:[%s281 + $0x40] sm:$0xff] %vm1390, %v1366
      %1400 = vst.msk [vmem:[%s281 + $0x48] sm:$0xff] %vm1390, %v1367
      %1401 = vst.msk [vmem:[%s281 + $0x50] sm:$0xff] %vm1390, %v1368
      %1402 = vst.msk [vmem:[%s281 + $0x58] sm:$0xff] %vm1390, %v1369
      %1403 = vst.msk [vmem:[%s281 + $0x60] sm:$0xff] %vm1390, %v1370
      %1404 = vst.msk [vmem:[%s281 + $0x68] sm:$0xff] %vm1390, %v1371
      %1405 = vst.msk [vmem:[%s281 + $0x70] sm:$0xff] %vm1390, %v1372
      %1406 = vst.msk [vmem:[%s281 + $0x78] sm:$0xff] %vm1390, %v1373
      %1407 = vst.msk [vmem:[%s281 + $0x80] sm:$0xff] %vm1390, %v1374
      %1408 = vst.msk [vmem:[%s281 + $0x88] sm:$0xff] %vm1390, %v1375
      %1409 = vst.msk [vmem:[%s281 + $0x90] sm:$0xff] %vm1390, %v1376
      %1410 = vst.msk [vmem:[%s281 + $0x98] sm:$0xff] %vm1390, %v1377
      %1411 = vst.msk [vmem:[%s281 + $0xa0] sm:$0xff] %vm1390, %v1378
      %1412 = vst.msk [vmem:[%s281 + $0xa8] sm:$0xff] %vm1390, %v1379
      %1413 = vst.msk [vmem:[%s281 + $0xb0] sm:$0xff] %vm1390, %v1380
      %1414 = vst.msk [vmem:[%s281 + $0xb8] sm:$0xff] %vm1390, %v1381
      %1415 = vst.msk [vmem:[%s281 + $0xc0] sm:$0xff] %vm1390, %v1382
      %1416 = vst.msk [vmem:[%s281 + $0xc8] sm:$0xff] %vm1390, %v1383
      %1417 = vst.msk [vmem:[%s281 + $0xd0] sm:$0xff] %vm1390, %v1384
      %1418 = vst.msk [vmem:[%s281 + $0xd8] sm:$0xff] %vm1390, %v1385
      %1419 = vst.msk [vmem:[%s281 + $0xe0] sm:$0xff] %vm1390, %v1386
      %1420 = vst.msk [vmem:[%s281 + $0xe8] sm:$0xff] %vm1390, %v1387
      %1421 = vst.msk [vmem:[%s281 + $0xf0] sm:$0xff] %vm1390, %v1388
      %1422 = vst.msk [vmem:[%s281 + $0xf8] sm:$0xff] %vm1390, %v1389
      %s1423 = smul.u32 32, %s19
      %p1424 = scmp.lt.s32.totalorder %s1423, 127
      %s1425 = scalar_select %p1424, %s1423, 127
      %s1426 = smul.addr %s1425, 8
      %s1427 = scalar_lea.vmem %s7, %s1426
      // Predicated region
      $region49: #{tpu_custom_call.1} parent=47 // pred_check
        %p1428 = pneg %p189
      $region50: #{tpu_custom_call.1} parent=47 // pred_check_branch
        %1430 = sbr.rel (%p1428) target = $region52
      $region51: #{tpu_custom_call.1} parent=47 // pred_region
        %s1431 = smul.u32 32, %s19
      $region52: #{tpu_custom_call.1} parent=47 // pred_fallthru
        _
    $region48: #{tpu_custom_call.1} parent=5 // pred_fallthru
      _
    %p1432 = scmp.le.s32.totalorder 2, %s14
    // Predicated region
    $region53: #{tpu_custom_call.1} parent=5 // pred_check
      %p1433 = pneg %p1432
    $region54: #{tpu_custom_call.1} parent=5 // pred_check_branch
      %1435 = sbr.rel (%p1433) target = $region56
    $region55: #{tpu_custom_call.1} parent=5 // pred_region
      %s1436 = ssub.s32 %s14, 2
      // Predicated region
      $region57: #{tpu_custom_call.1} parent=55 // pred_check
        %p1437 = pneg %p195
      $region58: #{tpu_custom_call.1} parent=55 // pred_check_branch
        %1439 = sbr.rel (%p1437) target = $region60
      $region59: #{tpu_custom_call.1} parent=55 // pred_region
        %s1440 = smul.u32 32, %s20
        %p1441 = scmp.lt.s32.totalorder %s1440, 127
        %s1442 = scalar_select %p1441, %s1440, 127
        %s1443 = smul.addr %s1442, 8
        %s1444 = scalar_lea.vmem %s7, %s1443
      $region60: #{tpu_custom_call.1} parent=55 // pred_fallthru
        _
    $region56: #{tpu_custom_call.1} parent=5 // pred_fallthru
      _
  $region6: #{tpu_custom_call.1} parent=0 // loop_footer
    %s18 = sadd.s32 1, %s14
  $region7: #{tpu_custom_call.1} parent=0 // loop_footer_branch
    %13 = sbr.rel target = $region3
  $region8: #{tpu_custom_call.1} parent=0 // loop_exit
    _

</llo_original>
